<compile_context>
chip_gen: v7x
topology: tpu7x:2x2x1
jax: 0.10.0
libtpu: 0.0.40
codegen_flags: <defaults>
</compile_context>

<pallas_src>
import functools

import jax
import jax.numpy as jnp
from jax.experimental import pallas as pl
from jax.experimental.pallas import tpu as pltpu

_TARGET_BLOCK_BYTES = 8 * 1024 * 1024     # ~8 MiB of input per grid step
_VMEM_BUDGET_BYTES = 40 * 1024 * 1024     # conservative: fits v7x's 64 MiB/TC


def _num_tensorcores() -> int:
    """Best-effort TensorCores-per-chip (2 on v7x, 1 on v5e/v6e); safe fallback 1."""
    try:
        info = pltpu.get_tpu_info()
        for attr in ("num_cores", "num_tensorcores", "tensorcores_per_chip",
                     "cores_per_chip", "num_cores_per_chip"):
            v = getattr(info, attr, None)
            if isinstance(v, int) and 1 <= v <= 8:
                return min(int(v), 2)
    except Exception:
        pass
    return 1


def _round_up(a: int, m: int) -> int:
    return ((a + m - 1) // m) * m


def _tv_kernel(x_ref, row_ref, col_ref, out_ref,
               maskh_ref, maskw_ref, hacc_ref, wacc_ref,
               *, shift_w, shift_h, H, N, nb, steps, mask_tail):
    # x_ref:   (nb, HWp)  block of nb flattened (and lane-padded) slabs
    # row_ref: (1, HWp)   int32 row index of every flattened lane (>= H on pad)
    # col_ref: (1, HWp)   int32 col index of every flattened lane
    # out_ref: (8, 128)   per-core output block (lane 0 = h_tv, lane 1 = w_tv)
    # maskh/maskw: (1, HWp) f32 cached neighbour masks (built once per core)
    # hacc/wacc:   (1, 1)   f32 resident scalar accumulators
    c = pl.program_id(0)
    i = pl.program_id(1)

    @pl.when(i == 0)
    def _init():
        row = row_ref[...]
        col = col_ref[...]
        rw = pltpu.roll(row, shift=shift_w, axis=1)
        cw = pltpu.roll(col, shift=shift_w, axis=1)
        rh = pltpu.roll(row, shift=shift_h, axis=1)
        ch = pltpu.roll(col, shift=shift_h, axis=1)
        # Masks derived from the *actually rolled* indices -> independent of the
        # roll direction convention; (row < H) / (rh < H) exclude lane padding.
        mw = (rw == row) & (jnp.abs(cw - col) == 1) & (row < H)
        mh = (ch == col) & (jnp.abs(rh - row) == 1) & (row < H) & (rh < H)
        maskw_ref[...] = mw.astype(jnp.float32)
        maskh_ref[...] = mh.astype(jnp.float32)
        hacc_ref[...] = jnp.zeros_like(hacc_ref)
        wacc_ref[...] = jnp.zeros_like(wacc_ref)

    x = x_ref[...].astype(jnp.float32)            # (nb, HWp)
    if mask_tail:
        # Ragged tail handled in-kernel (no wrapper pad copy): zero slab rows >= N.
        base = (c * steps + i) * nb
        rid = jax.lax.broadcasted_iota(jnp.int32, (nb, 1), 0) + base
        x = jnp.where(rid < N, x, 0.0)

    dw = pltpu.roll(x, shift=shift_w, axis=1) - x   # along-W neighbour diffs
    dh = pltpu.roll(x, shift=shift_h, axis=1) - x   # along-H neighbour diffs

    # Per-step reduction straight to scalars; tiny resident accumulators.
    wacc_ref[...] = wacc_ref[...] + jnp.sum(maskw_ref[...] * dw * dw)
    hacc_ref[...] = hacc_ref[...] + jnp.sum(maskh_ref[...] * dh * dh)

    @pl.when(i == pl.num_programs(1) - 1)
    def _finalize():
        lane = jax.lax.broadcasted_iota(jnp.int32, (8, 128), 1)
        out_ref[...] = jnp.where(lane == 0, hacc_ref[...],
                                 jnp.where(lane == 1, wacc_ref[...], 0.0))


def tv_loss(x, tv_loss_weight: float = 1.0):
    """Pallas implementation of TVLoss.forward for NCHW input x (H >= 2, W >= 2)."""
    B, C, H, W = x.shape
    N = B * C
    HW = H * W
    HWp = _round_up(HW, 128)          # lane-dense: unmasked vld/vst and rolls
    itemsize = jnp.dtype(x.dtype).itemsize

    num_cores = _num_tensorcores()
    if N < 16:
        num_cores = 1                  # never hand a core an all-padding range

    xr = x.reshape(N, HW)
    if HWp != HW:
        # Pad each slab to a multiple of 128 lanes; masks exclude the padding.
        xr = jnp.pad(xr, ((0, 0), (0, HWp - HW)))

    # --- slabs per block: multiple of 8, ~8 MiB of input, VMEM-bounded -------
    rows_target = _TARGET_BLOCK_BYTES // (HWp * itemsize)
    rows_vmem = _VMEM_BUDGET_BYTES // (2 * HWp * itemsize)   # double-buffered x
    nb = max(8, (min(rows_target, rows_vmem) // 8) * 8)
    # TODO(synk): tile the HW axis (with a W-element halo) for very large slabs
    # where even an (8, HWp) block overflows VMEM (e.g. 1024x1024 f32 on v7x).

    if num_cores == 1 and N <= nb:
        nb = N                         # block == full dim -> no ragged tail
        steps = 1
    else:
        nb = min(nb, _round_up(int(pl.cdiv(N, num_cores)), 8))
        steps = int(pl.cdiv(N, num_cores * nb))
    mask_tail = (num_cores * steps * nb) != N

    flat = jnp.arange(HWp, dtype=jnp.int32)
    row_ids = (flat // W).reshape(1, HWp)     # >= H on the lane padding
    col_ids = (flat % W).reshape(1, HWp)

    kernel = functools.partial(
        _tv_kernel, shift_w=1 % HWp, shift_h=W % HWp, H=H, N=N, nb=nb,
        steps=steps, mask_tail=mask_tail)

    vmem_bytes = (2 * nb * HWp * itemsize        # double-buffered input block
                  + 6 * HWp * 4                  # row/col inputs + mask scratch
                  + 4 * 8 * 128 * 4              # output blocks
                  + (2 << 20))                   # headroom for internal scratch
    vmem_limit = int(min(128 * 1024 * 1024, max(vmem_bytes, 4 * 1024 * 1024)))

    out = pl.pallas_call(
        kernel,
        out_shape=jax.ShapeDtypeStruct((num_cores * 8, 128), jnp.float32),
        grid=(num_cores, steps),
        in_specs=[
            pl.BlockSpec((nb, HWp), lambda c, i: (c * steps + i, 0)),
            pl.BlockSpec((1, HWp), lambda c, i: (0, 0)),
            pl.BlockSpec((1, HWp), lambda c, i: (0, 0)),
        ],
        out_specs=pl.BlockSpec((8, 128), lambda c, i: (c, 0)),
        scratch_shapes=[
            pltpu.VMEM((1, HWp), jnp.float32),   # cached mask_h
            pltpu.VMEM((1, HWp), jnp.float32),   # cached mask_w
            pltpu.VMEM((1, 1), jnp.float32),     # h accumulator
            pltpu.VMEM((1, 1), jnp.float32),     # w accumulator
        ],
        compiler_params=pltpu.CompilerParams(
            dimension_semantics=("parallel", "arbitrary"),
            vmem_limit_bytes=vmem_limit,
        ),
        cost_estimate=pl.CostEstimate(
            flops=int(8 * N * HWp),
            transcendentals=0,
            bytes_accessed=int(N * HWp * itemsize + 2 * HWp * 4
                               + num_cores * 8 * 128 * 4),
        ),
    )(xr, row_ids, col_ids)

    o = out.reshape(num_cores, 8, 128)
    h_tv = jnp.sum(o[:, 0, 0])
    w_tv = jnp.sum(o[:, 0, 1])
    if H == 2 and HWp == HW:
        # Only in this case the circular roll-by-W wraps row 1 back onto row 0,
        # counting each vertical pair twice.
        h_tv = h_tv * 0.5

    # Matches PyTorch: count_h = C*(H-1)*W, count_w = C*H*(W-1)
    count_h = C * (H - 1) * W
    count_w = C * H * (W - 1)
    return tv_loss_weight * 2.0 * (h_tv / count_h + w_tv / count_w) / B


def _tv_loss_ref(x, tv_loss_weight: float = 1.0):
    """Pure-JAX reference mirroring the PyTorch module."""
    B, C, H, W = x.shape
    count_h = C * (H - 1) * W
    count_w = C * H * (W - 1)
    h_tv = jnp.sum(jnp.square(x[:, :, 1:, :] - x[:, :, : H - 1, :]))
    w_tv = jnp.sum(jnp.square(x[:, :, :, 1:] - x[:, :, :, : W - 1]))
    return tv_loss_weight * 2.0 * (h_tv / count_h + w_tv / count_w) / B


if __name__ == "__main__":
    key = jax.random.PRNGKey(0)
    x = jax.random.normal(key, (2, 4, 16, 16), dtype=jnp.float32)

    out = jax.block_until_ready(tv_loss(x, tv_loss_weight=1.0))
    ref = jax.block_until_ready(_tv_loss_ref(x, tv_loss_weight=1.0))

    assert jnp.allclose(out, ref, rtol=1e-5, atol=1e-5), (out, ref)
    print("KERNEL_OK")
</pallas_src>

<mosaic_0001>
module attributes {stable_mosaic.version = 11 : i64} {
  func.func @_tv_kernel(%arg0: i32, %arg1: i32, %arg2: memref<8x256xf32, #tpu.memory_space<vmem>>, %arg3: memref<1x256xi32, #tpu.memory_space<vmem>>, %arg4: memref<1x256xi32, #tpu.memory_space<vmem>>, %arg5: memref<8x128xf32, #tpu.memory_space<vmem>>, %arg6: memref<1x256xf32, #tpu.memory_space<vmem>>, %arg7: memref<1x256xf32, #tpu.memory_space<vmem>>, %arg8: memref<1x1xf32, #tpu.memory_space<vmem>>, %arg9: memref<1x1xf32, #tpu.memory_space<vmem>>) attributes {dimension_semantics = [#tpu.dimension_semantics<parallel>, #tpu.dimension_semantics<arbitrary>], iteration_bounds = array<i64: 1, 1>, scalar_prefetch = 0 : i64, scratch_operands = 4 : i64, tpu.core_type = #tpu.core_type<tc>, window_params = [{transform_indices = @transform_0, window_bounds = array<i64: 8, 256>}, {pipeline_mode = #tpu.pipeline_mode<synchronous>, transform_indices = @transform_1, window_bounds = array<i64: 1, 256>}, {pipeline_mode = #tpu.pipeline_mode<synchronous>, transform_indices = @transform_2, window_bounds = array<i64: 1, 256>}, {transform_indices = @transform_3, window_bounds = array<i64: 8, 128>}]} {
    %c0_i32 = arith.constant 0 : i32
    %0 = arith.cmpi eq, %arg1, %c0_i32 : i32
    %1 = arith.extui %0 : i1 to i32
    %c0_i32_0 = arith.constant 0 : i32
    %2 = arith.cmpi ne, %1, %c0_i32_0 : i32
    scf.if %2 {
      %c0_17 = arith.constant 0 : index
      %c0_18 = arith.constant 0 : index
      %35 = vector.load %arg3[%c0_17, %c0_18] : memref<1x256xi32, #tpu.memory_space<vmem>>, vector<1x256xi32>
      %c0_19 = arith.constant 0 : index
      %c0_20 = arith.constant 0 : index
      %36 = vector.load %arg4[%c0_19, %c0_20] : memref<1x256xi32, #tpu.memory_space<vmem>>, vector<1x256xi32>
      %c1_i32_21 = arith.constant 1 : i32
      %37 = tpu.dynamic_rotate %35 by %c1_i32_21 dim 1 : vector<1x256xi32>, i32 -> vector<1x256xi32>
      %c1_i32_22 = arith.constant 1 : i32
      %38 = tpu.dynamic_rotate %36 by %c1_i32_22 dim 1 : vector<1x256xi32>, i32 -> vector<1x256xi32>
      %c16_i32_23 = arith.constant 16 : i32
      %39 = tpu.dynamic_rotate %35 by %c16_i32_23 dim 1 : vector<1x256xi32>, i32 -> vector<1x256xi32>
      %c16_i32_24 = arith.constant 16 : i32
      %40 = tpu.dynamic_rotate %36 by %c16_i32_24 dim 1 : vector<1x256xi32>, i32 -> vector<1x256xi32>
      %41 = arith.cmpi eq, %37, %35 : vector<1x256xi32>
      %42 = arith.subi %38, %36 : vector<1x256xi32>
      %43 = math.absi %42 : vector<1x256xi32>
      %c1_i32_25 = arith.constant 1 : i32
      %44 = vector.broadcast %c1_i32_25 : i32 to vector<1x256xi32>
      %45 = arith.cmpi eq, %43, %44 : vector<1x256xi32>
      %46 = arith.andi %41, %45 : vector<1x256xi1>
      %c16_i32_26 = arith.constant 16 : i32
      %47 = vector.broadcast %c16_i32_26 : i32 to vector<1x256xi32>
      %48 = arith.cmpi slt, %35, %47 : vector<1x256xi32>
      %49 = arith.andi %46, %48 : vector<1x256xi1>
      %50 = arith.cmpi eq, %40, %36 : vector<1x256xi32>
      %51 = arith.subi %39, %35 : vector<1x256xi32>
      %52 = math.absi %51 : vector<1x256xi32>
      %c1_i32_27 = arith.constant 1 : i32
      %53 = vector.broadcast %c1_i32_27 : i32 to vector<1x256xi32>
      %54 = arith.cmpi eq, %52, %53 : vector<1x256xi32>
      %55 = arith.andi %50, %54 : vector<1x256xi1>
      %c16_i32_28 = arith.constant 16 : i32
      %56 = vector.broadcast %c16_i32_28 : i32 to vector<1x256xi32>
      %57 = arith.cmpi slt, %35, %56 : vector<1x256xi32>
      %58 = arith.andi %55, %57 : vector<1x256xi1>
      %c16_i32_29 = arith.constant 16 : i32
      %59 = vector.broadcast %c16_i32_29 : i32 to vector<1x256xi32>
      %60 = arith.cmpi slt, %39, %59 : vector<1x256xi32>
      %61 = arith.andi %58, %60 : vector<1x256xi1>
      %62 = arith.extui %49 : vector<1x256xi1> to vector<1x256xi32>
      %63 = arith.sitofp %62 : vector<1x256xi32> to vector<1x256xf32>
      %c0_30 = arith.constant 0 : index
      %c0_31 = arith.constant 0 : index
      %64 = vector.load %arg7[%c0_30, %c0_31] : memref<1x256xf32, #tpu.memory_space<vmem>>, vector<1x256xf32>
      tpu.vector_store %arg7[%c0_30, %c0_31], %63 {strides = array<i32>} : memref<1x256xf32, #tpu.memory_space<vmem>>, vector<1x256xf32>,
      %65 = arith.extui %61 : vector<1x256xi1> to vector<1x256xi32>
      %66 = arith.sitofp %65 : vector<1x256xi32> to vector<1x256xf32>
      %c0_32 = arith.constant 0 : index
      %c0_33 = arith.constant 0 : index
      %67 = vector.load %arg6[%c0_32, %c0_33] : memref<1x256xf32, #tpu.memory_space<vmem>>, vector<1x256xf32>
      tpu.vector_store %arg6[%c0_32, %c0_33], %66 {strides = array<i32>} : memref<1x256xf32, #tpu.memory_space<vmem>>, vector<1x256xf32>,
      %cst_34 = arith.constant 0.000000e+00 : f32
      %68 = vector.broadcast %cst_34 : f32 to vector<1x1xf32>
      %c0_35 = arith.constant 0 : index
      %c0_36 = arith.constant 0 : index
      %69 = vector.load %arg8[%c0_35, %c0_36] : memref<1x1xf32, #tpu.memory_space<vmem>>, vector<1x1xf32>
      tpu.vector_store %arg8[%c0_35, %c0_36], %68 {strides = array<i32>} : memref<1x1xf32, #tpu.memory_space<vmem>>, vector<1x1xf32>,
      %cst_37 = arith.constant 0.000000e+00 : f32
      %70 = vector.broadcast %cst_37 : f32 to vector<1x1xf32>
      %c0_38 = arith.constant 0 : index
      %c0_39 = arith.constant 0 : index
      %71 = vector.load %arg9[%c0_38, %c0_39] : memref<1x1xf32, #tpu.memory_space<vmem>>, vector<1x1xf32>
      tpu.vector_store %arg9[%c0_38, %c0_39], %70 {strides = array<i32>} : memref<1x1xf32, #tpu.memory_space<vmem>>, vector<1x1xf32>,
    } else {
    }
    %c0 = arith.constant 0 : index
    %c0_1 = arith.constant 0 : index
    %3 = vector.load %arg2[%c0, %c0_1] : memref<8x256xf32, #tpu.memory_space<vmem>>, vector<8x256xf32>
    %c1_i32 = arith.constant 1 : i32
    %4 = tpu.dynamic_rotate %3 by %c1_i32 dim 1 : vector<8x256xf32>, i32 -> vector<8x256xf32>
    %5 = arith.subf %4, %3 : vector<8x256xf32>
    %c16_i32 = arith.constant 16 : i32
    %6 = tpu.dynamic_rotate %3 by %c16_i32 dim 1 : vector<8x256xf32>, i32 -> vector<8x256xf32>
    %7 = arith.subf %6, %3 : vector<8x256xf32>
    %c0_2 = arith.constant 0 : index
    %c0_3 = arith.constant 0 : index
    %8 = vector.load %arg9[%c0_2, %c0_3] : memref<1x1xf32, #tpu.memory_space<vmem>>, vector<1x1xf32>
    %c0_4 = arith.constant 0 : index
    %c0_5 = arith.constant 0 : index
    %9 = vector.load %arg7[%c0_4, %c0_5] : memref<1x256xf32, #tpu.memory_space<vmem>>, vector<1x256xf32>
    %10 = vector.broadcast %9 : vector<1x256xf32> to vector<8x256xf32>
    %11 = arith.mulf %10, %5 : vector<8x256xf32>
    %12 = arith.mulf %11, %5 : vector<8x256xf32>
    %13 = vector.shape_cast %12 : vector<8x256xf32> to vector<1x8x256xf32>
    %cst = arith.constant dense<0.000000e+00> : vector<1xf32>
    %14 = vector.multi_reduction <add>, %13, %cst [1, 2] : vector<1x8x256xf32> to vector<1xf32>
    %15 = vector.shape_cast %14 : vector<1xf32> to vector<1x1x1xf32>
    %16 = vector.extract %15[0, 0, 0] : f32 from vector<1x1x1xf32>
    %17 = vector.broadcast %16 : f32 to vector<1x1xf32>
    %18 = arith.addf %8, %17 : vector<1x1xf32>
    %c0_6 = arith.constant 0 : index
    %c0_7 = arith.constant 0 : index
    %19 = vector.load %arg9[%c0_6, %c0_7] : memref<1x1xf32, #tpu.memory_space<vmem>>, vector<1x1xf32>
    tpu.vector_store %arg9[%c0_6, %c0_7], %18 {strides = array<i32>} : memref<1x1xf32, #tpu.memory_space<vmem>>, vector<1x1xf32>,
    %c0_8 = arith.constant 0 : index
    %c0_9 = arith.constant 0 : index
    %20 = vector.load %arg8[%c0_8, %c0_9] : memref<1x1xf32, #tpu.memory_space<vmem>>, vector<1x1xf32>
    %c0_10 = arith.constant 0 : index
    %c0_11 = arith.constant 0 : index
    %21 = vector.load %arg6[%c0_10, %c0_11] : memref<1x256xf32, #tpu.memory_space<vmem>>, vector<1x256xf32>
    %22 = vector.broadcast %21 : vector<1x256xf32> to vector<8x256xf32>
    %23 = arith.mulf %22, %7 : vector<8x256xf32>
    %24 = arith.mulf %23, %7 : vector<8x256xf32>
    %25 = vector.shape_cast %24 : vector<8x256xf32> to vector<1x8x256xf32>
    %cst_12 = arith.constant dense<0.000000e+00> : vector<1xf32>
    %26 = vector.multi_reduction <add>, %25, %cst_12 [1, 2] : vector<1x8x256xf32> to vector<1xf32>
    %27 = vector.shape_cast %26 : vector<1xf32> to vector<1x1x1xf32>
    %28 = vector.extract %27[0, 0, 0] : f32 from vector<1x1x1xf32>
    %29 = vector.broadcast %28 : f32 to vector<1x1xf32>
    %30 = arith.addf %20, %29 : vector<1x1xf32>
    %c0_13 = arith.constant 0 : index
    %c0_14 = arith.constant 0 : index
    %31 = vector.load %arg8[%c0_13, %c0_14] : memref<1x1xf32, #tpu.memory_space<vmem>>, vector<1x1xf32>
    tpu.vector_store %arg8[%c0_13, %c0_14], %30 {strides = array<i32>} : memref<1x1xf32, #tpu.memory_space<vmem>>, vector<1x1xf32>,
    %c0_i32_15 = arith.constant 0 : i32
    %32 = arith.cmpi eq, %arg1, %c0_i32_15 : i32
    %33 = arith.extui %32 : i1 to i32
    %c0_i32_16 = arith.constant 0 : i32
    %34 = arith.cmpi ne, %33, %c0_i32_16 : i32
    scf.if %34 {
      %35 = tpu.iota {dimensions = array<i32: 1>} : vector<8x128xi32>
      %c0_i32_17 = arith.constant 0 : i32
      %36 = vector.broadcast %c0_i32_17 : i32 to vector<8x128xi32>
      %37 = arith.cmpi eq, %35, %36 : vector<8x128xi32>
      %c0_18 = arith.constant 0 : index
      %c0_19 = arith.constant 0 : index
      %38 = vector.load %arg8[%c0_18, %c0_19] : memref<1x1xf32, #tpu.memory_space<vmem>>, vector<1x1xf32>
      %c1_i32_20 = arith.constant 1 : i32
      %39 = vector.broadcast %c1_i32_20 : i32 to vector<8x128xi32>
      %40 = arith.cmpi eq, %35, %39 : vector<8x128xi32>
      %c0_21 = arith.constant 0 : index
      %c0_22 = arith.constant 0 : index
      %41 = vector.load %arg9[%c0_21, %c0_22] : memref<1x1xf32, #tpu.memory_space<vmem>>, vector<1x1xf32>
      %cst_23 = arith.constant 0.000000e+00 : f32
      %42 = vector.shape_cast %41 : vector<1x1xf32> to vector<1x1xf32>
      %43 = vector.broadcast %42 : vector<1x1xf32> to vector<8x128xf32>
      %44 = vector.broadcast %cst_23 : f32 to vector<8x128xf32>
      %45 = arith.select %40, %43, %44 : vector<8x128xi1>, vector<8x128xf32>
      %46 = vector.shape_cast %38 : vector<1x1xf32> to vector<1x1xf32>
      %47 = vector.broadcast %46 : vector<1x1xf32> to vector<8x128xf32>
      %48 = arith.select %37, %47, %45 : vector<8x128xi1>, vector<8x128xf32>
      %c0_24 = arith.constant 0 : index
      %c0_25 = arith.constant 0 : index
      %49 = vector.load %arg5[%c0_24, %c0_25] : memref<8x128xf32, #tpu.memory_space<vmem>>, vector<8x128xf32>
      tpu.vector_store %arg5[%c0_24, %c0_25], %48 {strides = array<i32>} : memref<8x128xf32, #tpu.memory_space<vmem>>, vector<8x128xf32>,
    } else {
    }
    return
  }
  func.func @transform_0(%arg0: i32, %arg1: i32) -> (i32, i32) {
    %c1_i32 = arith.constant 1 : i32
    %0 = arith.muli %arg0, %c1_i32 : i32
    %1 = arith.addi %0, %arg1 : i32
    %c0_i32 = arith.constant 0 : i32
    %c0_i32_0 = arith.constant 0 : i32
    return %1, %c0_i32 : i32, i32
  }
  func.func @transform_1(%arg0: i32, %arg1: i32) -> (i32, i32) {
    %c0_i32 = arith.constant 0 : i32
    %c0_i32_0 = arith.constant 0 : i32
    %c0_i32_1 = arith.constant 0 : i32
    return %c0_i32, %c0_i32_0 : i32, i32
  }
  func.func @transform_2(%arg0: i32, %arg1: i32) -> (i32, i32) {
    %c0_i32 = arith.constant 0 : i32
    %c0_i32_0 = arith.constant 0 : i32
    %c0_i32_1 = arith.constant 0 : i32
    return %c0_i32, %c0_i32_0 : i32, i32
  }
  func.func @transform_3(%arg0: i32, %arg1: i32) -> (i32, i32) {
    %c0_i32 = arith.constant 0 : i32
    %c0_i32_0 = arith.constant 0 : i32
    return %arg0, %c0_i32 : i32, i32
  }
}

</mosaic_0001>

<llo_original>
// kernel: tpu_custom_call.1
$region0: #{tpu_custom_call.1}
  #allocation0 [shape = 'u32[]', space=smem, size = 0x4, offset = 0x4, fixed_abs, tag = 'smem constant byte address 0x4 - core index']
  #allocation1 [shape = 'u32[144,128]{1,0:T(1,128)}', space=vmem, size = 0x12000, scoped, tag = 'internal scratch']
  #allocation2 [shape = 'f32[1,256]{1,0:T(1,128)}', space=vmem, size = 0x400, scoped, tag = 'scratch operand']
  #allocation3 [shape = 'f32[1,256]{1,0:T(1,128)}', space=vmem, size = 0x400, scoped, tag = 'scratch operand']
  #allocation4 [shape = 'f32[1,1]{1,0:T(1,128)}', space=vmem, size = 0x200, scoped, tag = 'scratch operand']
  #allocation5 [shape = 'f32[1,1]{1,0:T(1,128)}', space=vmem, size = 0x200, scoped, tag = 'scratch operand']
  %s0 = inlined_call_operand.hbm [shape: f32[8,256], index: 0, kind: input, shape index: {}]
  %s1 = inlined_call_operand.vmem [shape: s32[1,256], index: 1, kind: input, shape index: {}]
  %s2 = inlined_call_operand.vmem [shape: s32[1,256], index: 2, kind: input, shape index: {}]
  %s3 = inlined_call_operand.hbm [shape: f32[8,128], index: 3, kind: output, shape index: {}]
  %s4 = sld [smem:[#allocation0]]
  $region34: #{tpu_custom_call.1} parent=0
    _
  %s6 = ssub.s32 1, %s4
  %s7 = scalar_select 0, %s6, %s4
  $region1: #{tpu_custom_call.1} parent=0
    #allocation6 [shape = 'u8[8192]{0}', space=vmem, size = 0x2000, scoped, tag = 'input window, operand 0, single buffered']
    #allocation7 [shape = 's32[1]{0}', space=sflag, size = 0x4, scoped, tag = 'scoped memory for tpu_custom_call.1']
    #allocation8 [shape = 's32[1]{0}', space=sflag, size = 0x4, scoped, tag = 'scoped memory for tpu_custom_call.1']
    #allocation9 [shape = 'u8[4096]{0}', space=vmem, size = 0x1000, scoped, tag = 'output window, operand 0, single buffered']
    %8 = vsyncpa [#allocation7], 0
    %9 = vsyncpa [#allocation8], 0
    // Predicated region
    $region2: #{tpu_custom_call.1} parent=1 // pred_check
      _
    $region3: #{tpu_custom_call.1} parent=1 // pred_check_branch
      %11 = sbr.rel (0) target = $region5
    $region4: #{tpu_custom_call.1} parent=1 // pred_region
      %s12 = sadd.s32 0, 0
      %s14 = ssub.s32 256, 256
      %15 = vsyncadd [#allocation7], %s14
      %s16 = smul.addr %s12, 2
      %s17 = smul.addr %s16, 128
      %s18 = scalar_lea.hbm %s0, %s17
      %s20 = sshll.u32 [#allocation6], 4
      %s21 = int_to_ptr.vmem [resolvable:$true] %s20
      %23 = dma.hbm_to_vmem [thread:$0]  %s18, 256, %s21, [#allocation7]
    $region5: #{tpu_custom_call.1} parent=1 // pred_fallthru
      _
    // Predicated region
    $region6: #{tpu_custom_call.1} parent=1 // pred_check
      _
    $region7: #{tpu_custom_call.1} parent=1 // pred_check_branch
      %25 = sbr.rel (0) target = $region9
    $region8: #{tpu_custom_call.1} parent=1 // pred_region
      _
    $region9: #{tpu_custom_call.1} parent=1 // pred_fallthru
      _
    // Predicated region
    $region10: #{tpu_custom_call.1} parent=1 // pred_check
      _
    $region11: #{tpu_custom_call.1} parent=1 // pred_check_branch
      %27 = sbr.rel (0) target = $region13
    $region12: #{tpu_custom_call.1} parent=1 // pred_region
      _
    $region13: #{tpu_custom_call.1} parent=1 // pred_fallthru
      _
    // Predicated region
    $region14: #{tpu_custom_call.1} parent=1 // pred_check
      _
    $region15: #{tpu_custom_call.1} parent=1 // pred_check_branch
      %29 = sbr.rel (0) target = $region17
    $region16: #{tpu_custom_call.1} parent=1 // pred_region
      %30 = dma.done [#allocation7], 256
    $region17: #{tpu_custom_call.1} parent=1 // pred_fallthru
      _
    %s31 = sadd.s32 0, 0
    %p32 = scmp.eq.s32.totalorder 0, 0
    // Predicated region
    $region18: #{tpu_custom_call.1} parent=1 // pred_check
      %p33 = pneg %p32
    $region19: #{tpu_custom_call.1} parent=1 // pred_check_branch
      %35 = sbr.rel (%p33) target = $region21
    $region20: #{tpu_custom_call.1} parent=1 // pred_region
      %v36 = vld [vmem:[%s1] sm:$0x3]
      %v37 = vld [vmem:[%s2] sm:$0x3]
      %v38 = vlaneseq
      %v39 = vshrl.u32 %v38, 7
      %v40 = vsub.s32 0, %v39
      %v41 = vrot.slane %v36, %v40
      %v42 = vlaneseq
      %v43 = vshrl.u32 %v42, 7
      %v44 = vsub.s32 1, %v43
      %v45 = vrot.slane %v36, %v44
      %46 = vrot.lane.b32.xlu0 %v41, 1
      %v47 = vpop.permute.xlu0 %46
      %48 = vrot.lane.b32.xlu0 %v45, 1
      %v49 = vpop.permute.xlu0 %48
      %v50 = vlaneseq
      %v51 = vand.u32 %v50, 127
      %vm52 = vcmp.lt.s32.totalorder %v51, 1
      %v53 = vsel %vm52, %v47, %v49
      %v54 = vsel %vm52, %v49, %v47
      %v55 = vlaneseq
      %v56 = vshrl.u32 %v55, 7
      %v57 = vsub.s32 0, %v56
      %v58 = vrot.slane %v37, %v57
      %v59 = vlaneseq
      %v60 = vshrl.u32 %v59, 7
      %v61 = vsub.s32 1, %v60
      %v62 = vrot.slane %v37, %v61
      %63 = vrot.lane.b32.xlu0 %v58, 1
      %v64 = vpop.permute.xlu0 %63
      %65 = vrot.lane.b32.xlu0 %v62, 1
      %v66 = vpop.permute.xlu0 %65
      %v67 = vsel %vm52, %v64, %v66
      %v68 = vsel %vm52, %v66, %v64
      %69 = vrot.lane.b32.xlu0 %v41, 16
      %v70 = vpop.permute.xlu0 %69
      %71 = vrot.lane.b32.xlu0 %v45, 16
      %v72 = vpop.permute.xlu0 %71
      %vm73 = vcmp.lt.s32.totalorder %v51, 16
      %v74 = vsel %vm73, %v70, %v72
      %v75 = vsel %vm73, %v72, %v70
      %76 = vrot.lane.b32.xlu0 %v58, 16
      %v77 = vpop.permute.xlu0 %76
      %78 = vrot.lane.b32.xlu0 %v62, 16
      %v79 = vpop.permute.xlu0 %78
      %v80 = vsel %vm73, %v77, %v79
      %v81 = vsel %vm73, %v79, %v77
      %vm82 = vcmp.eq.s32.totalorder %v54, %v41
      %vm83 = vcmp.eq.s32.totalorder %v53, %v45
      %v84 = vsub.s32 %v68, %v58
      %v85 = vsub.s32 %v67, %v62
      %vm86 = vcmp.lt.s32.totalorder %v84, 0
      %v87 = vsub.s32 0, %v84
      %v88 = vsel %vm86, %v87, %v84
      %vm89 = vcmp.lt.s32.totalorder %v85, 0
      %v90 = vsub.s32 0, %v85
      %v91 = vsel %vm89, %v90, %v85
      %vm92 = vcmp.eq.s32.totalorder %v88, 1
      %vm93 = vcmp.eq.s32.totalorder %v91, 1
      %vm94 = vmand %vm82, %vm92
      %vm95 = vmand %vm83, %vm93
      %vm96 = vcmp.lt.s32.totalorder %v36, 16
      %v97 = vsel %vm96, 1, 0
      %v98 = vlaneseq
      %v99 = vshrl.u32 %v98, 7
      %v100 = vsub.s32 0, %v99
      %v101 = vrot.slane %v97, %v100
      %v102 = vlaneseq
      %v103 = vshrl.u32 %v102, 7
      %v104 = vsub.s32 1, %v103
      %v105 = vrot.slane %v97, %v104
      %vm106 = vcmp.ne.s32.totalorder %v101, 0
      %vm107 = vcmp.ne.s32.totalorder %v105, 0
      %vm108 = vmand %vm94, %vm106
      %vm109 = vmand %vm95, %vm107
      %vm110 = vcmp.eq.s32.totalorder %v81, %v58
      %vm111 = vcmp.eq.s32.totalorder %v80, %v62
      %v112 = vsub.s32 %v75, %v41
      %v113 = vsub.s32 %v74, %v45
      %vm114 = vcmp.lt.s32.totalorder %v112, 0
      %v115 = vsub.s32 0, %v112
      %v116 = vsel %vm114, %v115, %v112
      %vm117 = vcmp.lt.s32.totalorder %v113, 0
      %v118 = vsub.s32 0, %v113
      %v119 = vsel %vm117, %v118, %v113
      %vm120 = vcmp.eq.s32.totalorder %v116, 1
      %vm121 = vcmp.eq.s32.totalorder %v119, 1
      %vm122 = vmand %vm110, %vm120
      %vm123 = vmand %vm111, %vm121
      %vm124 = vmand %vm122, %vm106
      %vm125 = vmand %vm123, %vm107
      %vm126 = vcmp.lt.s32.totalorder %v75, 16
      %vm127 = vcmp.lt.s32.totalorder %v74, 16
      %vm128 = vmand %vm124, %vm126
      %vm129 = vmand %vm125, %vm127
      %v130 = vsel %vm108, 1, 0
      %v131 = vsel %vm109, 1, 0
      %v132 = vcvt.s32.f32 %v130
      %v133 = vcvt.s32.f32 %v131
      %v136 = vcombine.low %v132, %v133
      %v138 = vunpack.c.l.s4 1966171168
      %v139 = vunpack.c.0.s8 %v138
      %v140 = vlaneseq
      %v141 = vshrl.u32 %v140, 7
      %v142 = vsub.s32 %v139, %v141
      %v143 = vrot.slane %v136, %v142
      %v145 = vunpack.c.l.s4 1966171168
      %v146 = vunpack.c.0.s8 %v145
      %v147 = vlaneseq
      %v148 = vshrl.u32 %v147, 7
      %v149 = vsub.s32 %v146, %v148
      %v150 = vrot.slane %v143, %v149
      %v152 = vlaneseq
      %vm153 = vcmp.ge.s32.totalorder %v152, 0
      %vm154 = vcmp.lt.s32.totalorder %v152, 256
      %vm155 = vmand %vm153, %vm154
      %156 = vst.msk [vmem:[#allocation3] sm:$0x3] %vm155, %v150
      %v157 = vsel %vm128, 1, 0
      %v158 = vsel %vm129, 1, 0
      %v159 = vcvt.s32.f32 %v157
      %v160 = vcvt.s32.f32 %v158
      %v163 = vcombine.low %v159, %v160
      %v165 = vunpack.c.l.s4 1966171168
      %v166 = vunpack.c.0.s8 %v165
      %v167 = vlaneseq
      %v168 = vshrl.u32 %v167, 7
      %v169 = vsub.s32 %v166, %v168
      %v170 = vrot.slane %v163, %v169
      %v172 = vunpack.c.l.s4 1966171168
      %v173 = vunpack.c.0.s8 %v172
      %v174 = vlaneseq
      %v175 = vshrl.u32 %v174, 7
      %v176 = vsub.s32 %v173, %v175
      %v177 = vrot.slane %v170, %v176
      %179 = vst.msk [vmem:[#allocation2] sm:$0x3] %vm155, %v177
      %vm180 = vcmask 0
      %181 = vst.msk [vmem:[#allocation4] sm:$0x1] %vm180, 0.0
      %182 = vst.msk [vmem:[#allocation5] sm:$0x1] %vm180, 0.0
    $region21: #{tpu_custom_call.1} parent=1 // pred_fallthru
      _
    %v183 = vld [vmem:[#allocation6] sm:$0xff]
    %v184 = vld [vmem:[#allocation6 + $0x8] sm:$0xff]
    %185 = vrot.lane.b32.xlu0 %v183, 1
    %v186 = vpop.permute.xlu0 %185
    %187 = vrot.lane.b32.xlu0 %v184, 1
    %v188 = vpop.permute.xlu0 %187
    %v189 = vlaneseq
    %v190 = vand.u32 %v189, 127
    %vm191 = vcmp.lt.s32.totalorder %v190, 1
    %v192 = vsel %vm191, %v186, %v188
    %v193 = vsel %vm191, %v188, %v186
    %v194 = vsub.f32 %v193, %v183
    %v195 = vsub.f32 %v192, %v184
    %196 = vrot.lane.b32.xlu0 %v183, 16
    %v197 = vpop.permute.xlu0 %196
    %198 = vrot.lane.b32.xlu0 %v184, 16
    %v199 = vpop.permute.xlu0 %198
    %vm200 = vcmp.lt.s32.totalorder %v190, 16
    %v201 = vsel %vm200, %v197, %v199
    %v202 = vsel %vm200, %v199, %v197
    %v203 = vsub.f32 %v202, %v183
    %v204 = vsub.f32 %v201, %v184
    %v205 = vld [vmem:[#allocation5] sm:$0x1]
    %v206 = vld [vmem:[#allocation3] sm:$0x3]
    %v208 = vlaneseq
    %v209 = vshrl.u32 %v208, 7
    %v210 = vsub.s32 0, %v209
    %v211 = vrot.slane %v206, %v210
    %v212 = vlaneseq
    %v213 = vshrl.u32 %v212, 7
    %v214 = vsub.s32 1, %v213
    %v215 = vrot.slane %v206, %v214
    %v218 = vmul.f32 %v211, %v194
    %v219 = vmul.f32 %v215, %v195
    %v220 = vmul.f32 %v218, %v194
    %v221 = vmul.f32 %v219, %v195
    %v222 = vadd.f32 %v220, %v221
    %223 = vadd.xlane.f32.xlu0 %v222
    %v224 = vpop.xlane.xlu0 %223
    %v225 = vrot.slane %v224, 4
    %v226 = vadd.f32 %v224, %v225
    %v227 = vrot.slane %v226, 2
    %v228 = vadd.f32 %v226, %v227
    %v229 = vrot.slane %v228, 1
    %v230 = vadd.f32 %v228, %v229
    %s231 = vtos %v230
    %v232 = vstv %s231
    %v233 = vadd.f32 %v205, %v232
    %vm234 = vcmask 0
    %235 = vst.msk [vmem:[#allocation5] sm:$0x1] %vm234, %v233
    %v236 = vld [vmem:[#allocation4] sm:$0x1]
    %v237 = vld [vmem:[#allocation2] sm:$0x3]
    %v239 = vlaneseq
    %v240 = vshrl.u32 %v239, 7
    %v241 = vsub.s32 0, %v240
    %v242 = vrot.slane %v237, %v241
    %v243 = vlaneseq
    %v244 = vshrl.u32 %v243, 7
    %v245 = vsub.s32 1, %v244
    %v246 = vrot.slane %v237, %v245
    %v249 = vmul.f32 %v242, %v203
    %v250 = vmul.f32 %v246, %v204
    %v251 = vmul.f32 %v249, %v203
    %v252 = vmul.f32 %v250, %v204
    %v253 = vadd.f32 %v251, %v252
    %254 = vadd.xlane.f32.xlu0 %v253
    %v255 = vpop.xlane.xlu0 %254
    %v256 = vrot.slane %v255, 4
    %v257 = vadd.f32 %v255, %v256
    %v258 = vrot.slane %v257, 2
    %v259 = vadd.f32 %v257, %v258
    %v260 = vrot.slane %v259, 1
    %v261 = vadd.f32 %v259, %v260
    %s262 = vtos %v261
    %v263 = vstv %s262
    %v264 = vadd.f32 %v236, %v263
    %265 = vst.msk [vmem:[#allocation4] sm:$0x1] %vm234, %v264
    // Predicated region
    $region22: #{tpu_custom_call.1} parent=1 // pred_check
      %p266 = pneg %p32
    $region23: #{tpu_custom_call.1} parent=1 // pred_check_branch
      %268 = sbr.rel (%p266) target = $region25
    $region24: #{tpu_custom_call.1} parent=1 // pred_region
      %vm269 = vcmp.eq.s32.totalorder %v190, 0
      %v270 = vld [vmem:[#allocation4] sm:$0x1]
      %vm271 = vcmp.eq.s32.totalorder %v190, 1
      %v272 = vld [vmem:[#allocation5] sm:$0x1]
      %v274 = vlaneseq
      %v275 = vshrl.u32 %v274, 7
      %v276 = vsub.s32 0, %v275
      %v277 = vrot.slane %v272, %v276
      %278 = vset.pattern.permute.xlu0 0
      %279 = vperm.xlu0 %278, %v277
      %v280 = vpop.permute.xlu0 %279
      %v282 = vsel %vm271, %v280, 0.0
      %v284 = vlaneseq
      %v285 = vshrl.u32 %v284, 7
      %v286 = vsub.s32 0, %v285
      %v287 = vrot.slane %v270, %v286
      %288 = vset.pattern.permute.xlu0 0
      %289 = vperm.xlu0 %288, %v287
      %v290 = vpop.permute.xlu0 %289
      %v292 = vsel %vm269, %v290, %v282
      %293 = vst [vmem:[#allocation9] sm:$0xff] %v292
    $region25: #{tpu_custom_call.1} parent=1 // pred_fallthru
      _
    // Predicated region
    $region26: #{tpu_custom_call.1} parent=1 // pred_check
      _
    $region27: #{tpu_custom_call.1} parent=1 // pred_check_branch
      %295 = sbr.rel (0) target = $region29
    $region28: #{tpu_custom_call.1} parent=1 // pred_region
      %s297 = ssub.s32 128, 128
      %298 = vsyncadd [#allocation8], %s297
      %s300 = sshll.u32 [#allocation9], 4
      %s301 = int_to_ptr.vmem [resolvable:$true] %s300
      %303 = dma.vmem_to_hbm [thread:$0]  %s301, 128, %s3, [#allocation8]
    $region29: #{tpu_custom_call.1} parent=1 // pred_fallthru
      _
    // Predicated region
    $region30: #{tpu_custom_call.1} parent=1 // pred_check
      _
    $region31: #{tpu_custom_call.1} parent=1 // pred_check_branch
      %305 = sbr.rel (0) target = $region33
    $region32: #{tpu_custom_call.1} parent=1 // pred_region
      %306 = dma.done [#allocation8], 128
    $region33: #{tpu_custom_call.1} parent=1 // pred_fallthru
      _
    %307 = vsyncpa [#allocation7], 1
    %308 = vsyncpa [#allocation8], 1

</llo_original>
